<compile_context>
chip_gen: v6e
topology: v6e:2x2x1
jax: 0.10.0
libtpu: 0.0.40
codegen_flags: <defaults>
</compile_context>

<pallas_src>
import functools
import math

import jax
import jax.numpy as jnp
import numpy as np
from jax import lax
from jax.experimental import pallas as pl
from jax.experimental.pallas import tpu as pltpu

EPS = 1e-5  # nn.LayerNorm default


def _erf(x):
    """erf via Abramowitz & Stegun 7.1.26 (max abs error 1.5e-7), f32 math."""
    a1, a2, a3, a4, a5 = (0.254829592, -0.284496736, 1.421413741,
                          -1.453152027, 1.061405429)
    p = 0.3275911
    ax = jnp.abs(x)
    t = 1.0 / (1.0 + p * ax)
    poly = ((((a5 * t + a4) * t + a3) * t + a2) * t + a1) * t
    y = 1.0 - poly * jnp.exp(-ax * ax)
    return jnp.where(x >= 0, y, -y)


# ----------------------------------------------------------------------------
# Fused Pallas kernel: Linear -> LayerNorm -> GELU -> Linear
# Grid = (row_blocks, k_blocks); K is the innermost reduction axis.
# ----------------------------------------------------------------------------
def _text_projector_kernel(x_ref, w1_ref, b1_ref, g_ref, beta_ref,
                           w2_ref, b2_ref, o_ref, acc_ref, *, eps):
    k = pl.program_id(1)

    @pl.when(k == 0)
    def _init():
        acc_ref[...] = jnp.zeros_like(acc_ref)

    # Partial Linear(D_in -> 2H): x_tile (tr, tk) contracted with w1_tile
    # (2H, tk) along dim 1 <-> 1 (PyTorch (out, in) layout, no transpose).
    # Operands stay in their native dtype; accumulation is f32 on the MXU.
    acc_ref[...] += lax.dot_general(
        x_ref[...], w1_ref[...],
        dimension_numbers=(((1,), (1,)), ((), ())),
        preferred_element_type=jnp.float32)

    @pl.when(k == pl.num_programs(1) - 1)
    def _finalize():
        h = acc_ref[...] + b1_ref[...]                       # (tr, 2H), f32

        # LayerNorm(2H), affine, f32.
        m = jnp.mean(h, axis=-1, keepdims=True)
        v = jnp.mean(jnp.square(h - m), axis=-1, keepdims=True)
        h = (h - m) * lax.rsqrt(v + eps) * g_ref[...] + beta_ref[...]

        # Exact GELU: 0.5 * h * (1 + erf(h / sqrt(2)))  (torch.nn.GELU()).
        # Kept in f32; GELU/LN ride in spare VPU/EUP/XLU slots under the matmul.
        h = 0.5 * h * (1.0 + _erf(h * (1.0 / math.sqrt(2.0))))

        # Linear(2H -> H): h @ W2.T with W2 stored (H, 2H); h cast back to the
        # compute dtype (bf16 when inputs are bf16) for the MXU.
        out = lax.dot_general(
            h.astype(w2_ref.dtype), w2_ref[...],
            dimension_numbers=(((1,), (1,)), ((), ())),
            preferred_element_type=jnp.float32) + b2_ref[...]

        o_ref[...] = out.astype(o_ref.dtype)


# ----------------------------------------------------------------------------
# Wrapper
# ----------------------------------------------------------------------------
def _round_up(n, m):
    return ((n + m - 1) // m) * m


def _pick_k_tile(d_in, target=512):
    """Largest multiple of 128 <= target that divides D_in (else full width)."""
    if d_in % 128 != 0:
        return d_in                       # full-width block == array dim: OK
    tk = min(_round_up(target, 128), d_in)
    while d_in % tk:
        tk -= 128
    return tk


def text_projector(text_embeddings, params, *, row_tile=512, k_tile=512,
                   compute_dtype=None):
    """Pallas forward of TextProjector. Accepts inputs of shape (..., D_in)."""
    w1, b1 = params["w1"], params["b1"]          # (2H, D_in), (2H,)
    g, beta = params["ln_g"], params["ln_b"]     # (2H,), (2H,)
    w2, b2 = params["w2"], params["b2"]          # (H, 2H), (H,)

    D_in = text_embeddings.shape[-1]
    H2 = w1.shape[0]
    H = w2.shape[0]
    lead = text_embeddings.shape[:-1]
    n_rows = int(np.prod(lead)) if lead else 1
    x2 = text_embeddings.reshape(n_rows, D_in)

    # Matmul operands in the activation's native dtype (don't upcast to f32);
    # LN/GELU/accumulation remain f32 inside the kernel.
    cdt = jnp.dtype(compute_dtype) if compute_dtype is not None else x2.dtype
    x2 = x2.astype(cdt)
    w1c = w1.astype(cdt)
    w2c = w2.astype(cdt)

    # Row tiling: multiple of 16 sublanes (covers bf16 packing).  No jnp.pad
    # HBM copy -- tail row blocks use Pallas' OOB-masked partial-tile handling.
    tr = min(row_tile, _round_up(n_rows, 16))
    n_row_blocks = pl.cdiv(n_rows, tr)
    tk = _pick_k_tile(D_in, k_tile)
    n_k_blocks = D_in // tk
    # VMEM footprint per step ~ (tr*tk + H2*tk)*2 bufs*itemsize + tr*H2*4 ;
    # ~2.5 MiB at tr=512, tk=512, bf16 -> fits all generations (incl. v7x 64MB).

    # Small params stay f32 (bias/LN math in f32), as (1, dim) lane rows.
    b1r = b1.astype(jnp.float32).reshape(1, H2)
    gr = g.astype(jnp.float32).reshape(1, H2)
    betar = beta.astype(jnp.float32).reshape(1, H2)
    b2r = b2.astype(jnp.float32).reshape(1, H)

    def const_spec(a):
        return pl.BlockSpec(a.shape, lambda i, k: (0,) * a.ndim)

    itemsize = jnp.dtype(cdt).itemsize
    cost = pl.CostEstimate(
        flops=2 * n_rows * (D_in * H2 + H2 * H),
        transcendentals=n_rows * H2,                     # exp in erf-GELU
        bytes_accessed=(n_rows * D_in * itemsize
                        + int(w1c.size) * itemsize + int(w2c.size) * itemsize
                        + (3 * H2 + H) * 4
                        + n_rows * H * jnp.dtype(text_embeddings.dtype).itemsize),
    )

    out = pl.pallas_call(
        functools.partial(_text_projector_kernel, eps=EPS),
        out_shape=jax.ShapeDtypeStruct((n_rows, H), text_embeddings.dtype),
        grid=(n_row_blocks, n_k_blocks),
        in_specs=[
            pl.BlockSpec((tr, tk), lambda i, k: (i, k)),     # x
            pl.BlockSpec((H2, tk), lambda i, k: (0, k)),     # w1 (K-tiled)
            const_spec(b1r), const_spec(gr), const_spec(betar),
            const_spec(w2c), const_spec(b2r),
        ],
        out_specs=pl.BlockSpec((tr, H), lambda i, k: (i, 0)),
        scratch_shapes=[pltpu.VMEM((tr, H2), jnp.float32)],  # f32 accumulator
        compiler_params=pltpu.CompilerParams(
            # Rows split over v7x's 2 TensorCores; K is the reduction.
            dimension_semantics=("parallel", "arbitrary")),
        cost_estimate=cost,
    )(x2, w1c, b1r, gr, betar, w2c, b2r)

    return out.reshape(*lead, H)


# ----------------------------------------------------------------------------
# Pure-JAX reference (mirrors the PyTorch forward) for verification
# ----------------------------------------------------------------------------
def text_projector_ref(x, p):
    h = x @ p["w1"].T + p["b1"]
    m = jnp.mean(h, axis=-1, keepdims=True)
    v = jnp.mean(jnp.square(h - m), axis=-1, keepdims=True)
    h = (h - m) / jnp.sqrt(v + EPS) * p["ln_g"] + p["ln_b"]
    h = jax.nn.gelu(h, approximate=False)   # exact erf GELU = torch nn.GELU()
    return h @ p["w2"].T + p["b2"]


# ----------------------------------------------------------------------------
# Deterministic parameter init (PyTorch (out, in) weight layout)
# ----------------------------------------------------------------------------
def init_params(key, text_embed_dim, hidden_size):
    D, H = text_embed_dim, hidden_size
    H2 = 2 * H
    ks = iter(jax.random.split(key, 8))
    rnd = lambda shape, s: s * jax.random.normal(next(ks), shape, jnp.float32)
    return dict(
        w1=rnd((H2, D), 1.0 / math.sqrt(D)), b1=rnd((H2,), 0.02),
        ln_g=1.0 + rnd((H2,), 0.05), ln_b=rnd((H2,), 0.05),
        w2=rnd((H, H2), 1.0 / math.sqrt(H2)), b2=rnd((H,), 0.02),
    )


# ----------------------------------------------------------------------------
if __name__ == "__main__":
    D_IN, HIDDEN = 1024, 128          # small version of defaults (4096, 128)
    B, L = 2, 8

    key = jax.random.PRNGKey(0)
    k_p, k_x, k_x2, k_x3 = jax.random.split(key, 4)
    params = init_params(k_p, D_IN, HIDDEN)

    # 1) f32, 3-D (B, L, D) input — exercises the K-accumulation loop.
    x = jax.random.normal(k_x, (B, L, D_IN), jnp.float32)
    out = jax.block_until_ready(text_projector(x, params))
    ref = text_projector_ref(x, params)
    assert out.shape == (B, L, HIDDEN)
    assert np.allclose(np.asarray(out), np.asarray(ref), atol=2e-4, rtol=2e-4), \
        "Pallas kernel output mismatch vs reference (3-D f32 input)"

    # 2) f32, 2-D input whose row count is not a sublane multiple — exercises
    #    the OOB-masked tail row block (no jnp.pad HBM copy in the wrapper).
    x2 = jax.random.normal(k_x2, (3, D_IN), jnp.float32)
    out2 = jax.block_until_ready(text_projector(x2, params))
    ref2 = text_projector_ref(x2, params)
    assert out2.shape == (3, HIDDEN)
    assert np.allclose(np.asarray(out2), np.asarray(ref2), atol=2e-4, rtol=2e-4), \
        "Pallas kernel output mismatch vs reference (2-D f32 input)"

    # 3) bf16 activations — native-dtype (bf16) MXU operands, f32 LN/GELU.
    x3f = jax.random.normal(k_x3, (5, D_IN), jnp.float32)
    x3 = x3f.astype(jnp.bfloat16)
    out3 = jax.block_until_ready(text_projector(x3, params))
    ref3 = text_projector_ref(x3.astype(jnp.float32), params)
    assert out3.shape == (5, HIDDEN)
    assert out3.dtype == jnp.bfloat16
    out3_f = np.asarray(out3.astype(jnp.float32))
    assert np.allclose(out3_f, np.asarray(ref3), atol=6e-2, rtol=6e-2), \
        "Pallas kernel output mismatch vs reference (2-D bf16 input)"

    print("KERNEL_OK")
</pallas_src>

<mosaic_0001>
module attributes {stable_mosaic.version = 11 : i64} {
  func.func @_text_projector_kernel(%arg0: i32, %arg1: i32, %arg2: memref<16x512xf32, #tpu.memory_space<vmem>>, %arg3: memref<256x512xf32, #tpu.memory_space<vmem>>, %arg4: memref<1x256xf32, #tpu.memory_space<vmem>>, %arg5: memref<1x256xf32, #tpu.memory_space<vmem>>, %arg6: memref<1x256xf32, #tpu.memory_space<vmem>>, %arg7: memref<128x256xf32, #tpu.memory_space<vmem>>, %arg8: memref<1x128xf32, #tpu.memory_space<vmem>>, %arg9: memref<16x128xf32, #tpu.memory_space<vmem>>, %arg10: memref<16x256xf32, #tpu.memory_space<vmem>>) attributes {dimension_semantics = [#tpu.dimension_semantics<parallel>, #tpu.dimension_semantics<arbitrary>], iteration_bounds = array<i64: 1, 2>, scalar_prefetch = 0 : i64, scratch_operands = 1 : i64, tpu.core_type = #tpu.core_type<tc>, window_params = [{transform_indices = @transform_0, window_bounds = array<i64: 16, 512>}, {transform_indices = @transform_1, window_bounds = array<i64: 256, 512>}, {pipeline_mode = #tpu.pipeline_mode<synchronous>, transform_indices = @transform_2, window_bounds = array<i64: 1, 256>}, {pipeline_mode = #tpu.pipeline_mode<synchronous>, transform_indices = @transform_3, window_bounds = array<i64: 1, 256>}, {pipeline_mode = #tpu.pipeline_mode<synchronous>, transform_indices = @transform_4, window_bounds = array<i64: 1, 256>}, {pipeline_mode = #tpu.pipeline_mode<synchronous>, transform_indices = @transform_5, window_bounds = array<i64: 128, 256>}, {pipeline_mode = #tpu.pipeline_mode<synchronous>, transform_indices = @transform_6, window_bounds = array<i64: 1, 128>}, {transform_indices = @transform_7, window_bounds = array<i64: 16, 128>}]} {
    %c0_i32 = arith.constant 0 : i32
    %0 = arith.cmpi eq, %arg1, %c0_i32 : i32
    %1 = arith.extui %0 : i1 to i32
    %c0_i32_0 = arith.constant 0 : i32
    %2 = arith.cmpi ne, %1, %c0_i32_0 : i32
    scf.if %2 {
      %cst_9 = arith.constant 0.000000e+00 : f32
      %12 = vector.broadcast %cst_9 : f32 to vector<16x256xf32>
      %c0_10 = arith.constant 0 : index
      %c0_11 = arith.constant 0 : index
      %13 = vector.load %arg10[%c0_10, %c0_11] : memref<16x256xf32, #tpu.memory_space<vmem>>, vector<16x256xf32>
      tpu.vector_store %arg10[%c0_10, %c0_11], %12 {strides = array<i32>} : memref<16x256xf32, #tpu.memory_space<vmem>>, vector<16x256xf32>,
    } else {
    }
    %c0 = arith.constant 0 : index
    %c0_1 = arith.constant 0 : index
    %3 = vector.load %arg10[%c0, %c0_1] : memref<16x256xf32, #tpu.memory_space<vmem>>, vector<16x256xf32>
    %c0_2 = arith.constant 0 : index
    %c0_3 = arith.constant 0 : index
    %4 = vector.load %arg2[%c0_2, %c0_3] : memref<16x512xf32, #tpu.memory_space<vmem>>, vector<16x512xf32>
    %c0_4 = arith.constant 0 : index
    %c0_5 = arith.constant 0 : index
    %5 = vector.load %arg3[%c0_4, %c0_5] : memref<256x512xf32, #tpu.memory_space<vmem>>, vector<256x512xf32>
    %cst = arith.constant dense<0.000000e+00> : vector<16x256xf32>
    %6 = tpu.matmul %4, %5, %cst {dimension_numbers = #tpu.dot_dimension_numbers<[1], [1], [0], [0], [0, 0, 1, 0], [], []>} : vector<16x512xf32>, vector<256x512xf32>, vector<16x256xf32> -> vector<16x256xf32>
    %7 = arith.addf %3, %6 : vector<16x256xf32>
    %c0_6 = arith.constant 0 : index
    %c0_7 = arith.constant 0 : index
    %8 = vector.load %arg10[%c0_6, %c0_7] : memref<16x256xf32, #tpu.memory_space<vmem>>, vector<16x256xf32>
    tpu.vector_store %arg10[%c0_6, %c0_7], %7 {strides = array<i32>} : memref<16x256xf32, #tpu.memory_space<vmem>>, vector<16x256xf32>,
    %c1_i32 = arith.constant 1 : i32
    %9 = arith.cmpi eq, %arg1, %c1_i32 : i32
    %10 = arith.extui %9 : i1 to i32
    %c0_i32_8 = arith.constant 0 : i32
    %11 = arith.cmpi ne, %10, %c0_i32_8 : i32
    scf.if %11 {
      %c0_9 = arith.constant 0 : index
      %c0_10 = arith.constant 0 : index
      %12 = vector.load %arg10[%c0_9, %c0_10] : memref<16x256xf32, #tpu.memory_space<vmem>>, vector<16x256xf32>
      %c0_11 = arith.constant 0 : index
      %c0_12 = arith.constant 0 : index
      %13 = vector.load %arg4[%c0_11, %c0_12] : memref<1x256xf32, #tpu.memory_space<vmem>>, vector<1x256xf32>
      %14 = vector.broadcast %13 : vector<1x256xf32> to vector<16x256xf32>
      %15 = arith.addf %12, %14 : vector<16x256xf32>
      %cst_13 = arith.constant dense<0.000000e+00> : vector<16xf32>
      %16 = vector.multi_reduction <add>, %15, %cst_13 [1] : vector<16x256xf32> to vector<16xf32>
      %17 = vector.shape_cast %16 : vector<16xf32> to vector<16x1xf32>
      %cst_14 = arith.constant 2.560000e+02 : f32
      %18 = vector.broadcast %cst_14 : f32 to vector<16x1xf32>
      %19 = arith.divf %17, %18 : vector<16x1xf32>
      %20 = vector.broadcast %19 : vector<16x1xf32> to vector<16x256xf32>
      %21 = arith.subf %15, %20 : vector<16x256xf32>
      %22 = arith.mulf %21, %21 : vector<16x256xf32>
      %cst_15 = arith.constant dense<0.000000e+00> : vector<16xf32>
      %23 = vector.multi_reduction <add>, %22, %cst_15 [1] : vector<16x256xf32> to vector<16xf32>
      %24 = vector.shape_cast %23 : vector<16xf32> to vector<16x1xf32>
      %cst_16 = arith.constant 2.560000e+02 : f32
      %25 = vector.broadcast %cst_16 : f32 to vector<16x1xf32>
      %26 = arith.divf %24, %25 : vector<16x1xf32>
      %27 = vector.broadcast %19 : vector<16x1xf32> to vector<16x256xf32>
      %28 = arith.subf %15, %27 : vector<16x256xf32>
      %cst_17 = arith.constant 9.99999974E-6 : f32
      %29 = vector.broadcast %cst_17 : f32 to vector<16x1xf32>
      %30 = arith.addf %26, %29 : vector<16x1xf32>
      %31 = math.rsqrt %30 : vector<16x1xf32>
      %32 = vector.broadcast %31 : vector<16x1xf32> to vector<16x256xf32>
      %33 = arith.mulf %28, %32 : vector<16x256xf32>
      %c0_18 = arith.constant 0 : index
      %c0_19 = arith.constant 0 : index
      %34 = vector.load %arg5[%c0_18, %c0_19] : memref<1x256xf32, #tpu.memory_space<vmem>>, vector<1x256xf32>
      %35 = vector.broadcast %34 : vector<1x256xf32> to vector<16x256xf32>
      %36 = arith.mulf %33, %35 : vector<16x256xf32>
      %c0_20 = arith.constant 0 : index
      %c0_21 = arith.constant 0 : index
      %37 = vector.load %arg6[%c0_20, %c0_21] : memref<1x256xf32, #tpu.memory_space<vmem>>, vector<1x256xf32>
      %38 = vector.broadcast %37 : vector<1x256xf32> to vector<16x256xf32>
      %39 = arith.addf %36, %38 : vector<16x256xf32>
      %cst_22 = arith.constant 5.000000e-01 : f32
      %40 = vector.broadcast %cst_22 : f32 to vector<16x256xf32>
      %41 = arith.mulf %40, %39 : vector<16x256xf32>
      %cst_23 = arith.constant 0.707106769 : f32
      %42 = vector.broadcast %cst_23 : f32 to vector<16x256xf32>
      %43 = arith.mulf %39, %42 : vector<16x256xf32>
      %44 = math.absf %43 : vector<16x256xf32>
      %cst_24 = arith.constant 0.327591091 : f32
      %45 = vector.broadcast %cst_24 : f32 to vector<16x256xf32>
      %46 = arith.mulf %45, %44 : vector<16x256xf32>
      %cst_25 = arith.constant 1.000000e+00 : f32
      %47 = vector.broadcast %cst_25 : f32 to vector<16x256xf32>
      %48 = arith.addf %47, %46 : vector<16x256xf32>
      %cst_26 = arith.constant 1.000000e+00 : f32
      %49 = vector.broadcast %cst_26 : f32 to vector<16x256xf32>
      %50 = arith.divf %49, %48 : vector<16x256xf32>
      %cst_27 = arith.constant 1.06140542 : f32
      %51 = vector.broadcast %cst_27 : f32 to vector<16x256xf32>
      %52 = arith.mulf %51, %50 : vector<16x256xf32>
      %cst_28 = arith.constant -1.45315206 : f32
      %53 = vector.broadcast %cst_28 : f32 to vector<16x256xf32>
      %54 = arith.addf %52, %53 : vector<16x256xf32>
      %55 = arith.mulf %54, %50 : vector<16x256xf32>
      %cst_29 = arith.constant 1.42141378 : f32
      %56 = vector.broadcast %cst_29 : f32 to vector<16x256xf32>
      %57 = arith.addf %55, %56 : vector<16x256xf32>
      %58 = arith.mulf %57, %50 : vector<16x256xf32>
      %cst_30 = arith.constant -0.284496725 : f32
      %59 = vector.broadcast %cst_30 : f32 to vector<16x256xf32>
      %60 = arith.addf %58, %59 : vector<16x256xf32>
      %61 = arith.mulf %60, %50 : vector<16x256xf32>
      %cst_31 = arith.constant 0.254829586 : f32
      %62 = vector.broadcast %cst_31 : f32 to vector<16x256xf32>
      %63 = arith.addf %61, %62 : vector<16x256xf32>
      %64 = arith.mulf %63, %50 : vector<16x256xf32>
      %cst_32 = arith.constant 0.000000e+00 : f32
      %65 = vector.broadcast %cst_32 : f32 to vector<16x256xf32>
      %66 = arith.subf %65, %44 : vector<16x256xf32>
      %67 = arith.mulf %66, %44 : vector<16x256xf32>
      %68 = math.exp %67 : vector<16x256xf32>
      %69 = arith.mulf %64, %68 : vector<16x256xf32>
      %cst_33 = arith.constant 1.000000e+00 : f32
      %70 = vector.broadcast %cst_33 : f32 to vector<16x256xf32>
      %71 = arith.subf %70, %69 : vector<16x256xf32>
      %cst_34 = arith.constant 0.000000e+00 : f32
      %72 = vector.broadcast %cst_34 : f32 to vector<16x256xf32>
      %73 = arith.cmpf oge, %43, %72 : vector<16x256xf32>
      %cst_35 = arith.constant 0.000000e+00 : f32
      %74 = vector.broadcast %cst_35 : f32 to vector<16x256xf32>
      %75 = arith.subf %74, %71 : vector<16x256xf32>
      %76 = arith.select %73, %71, %75 : vector<16x256xi1>, vector<16x256xf32>
      %cst_36 = arith.constant 1.000000e+00 : f32
      %77 = vector.broadcast %cst_36 : f32 to vector<16x256xf32>
      %78 = arith.addf %77, %76 : vector<16x256xf32>
      %79 = arith.mulf %41, %78 : vector<16x256xf32>
      %c0_37 = arith.constant 0 : index
      %c0_38 = arith.constant 0 : index
      %80 = vector.load %arg7[%c0_37, %c0_38] : memref<128x256xf32, #tpu.memory_space<vmem>>, vector<128x256xf32>
      %cst_39 = arith.constant dense<0.000000e+00> : vector<16x128xf32>
      %81 = tpu.matmul %79, %80, %cst_39 {dimension_numbers = #tpu.dot_dimension_numbers<[1], [1], [0], [0], [0, 0, 1, 0], [], []>} : vector<16x256xf32>, vector<128x256xf32>, vector<16x128xf32> -> vector<16x128xf32>
      %c0_40 = arith.constant 0 : index
      %c0_41 = arith.constant 0 : index
      %82 = vector.load %arg8[%c0_40, %c0_41] : memref<1x128xf32, #tpu.memory_space<vmem>>, vector<1x128xf32>
      %83 = vector.broadcast %82 : vector<1x128xf32> to vector<16x128xf32>
      %84 = arith.addf %81, %83 : vector<16x128xf32>
      %c0_42 = arith.constant 0 : index
      %c0_43 = arith.constant 0 : index
      %85 = vector.load %arg9[%c0_42, %c0_43] : memref<16x128xf32, #tpu.memory_space<vmem>>, vector<16x128xf32>
      tpu.vector_store %arg9[%c0_42, %c0_43], %84 {strides = array<i32>} : memref<16x128xf32, #tpu.memory_space<vmem>>, vector<16x128xf32>,
    } else {
    }
    return
  }
  func.func @transform_0(%arg0: i32, %arg1: i32) -> (i32, i32) {
    %c0_i32 = arith.constant 0 : i32
    return %arg0, %arg1 : i32, i32
  }
  func.func @transform_1(%arg0: i32, %arg1: i32) -> (i32, i32) {
    %c0_i32 = arith.constant 0 : i32
    %c0_i32_0 = arith.constant 0 : i32
    return %c0_i32, %arg1 : i32, i32
  }
  func.func @transform_2(%arg0: i32, %arg1: i32) -> (i32, i32) {
    %c0_i32 = arith.constant 0 : i32
    %c0_i32_0 = arith.constant 0 : i32
    %c0_i32_1 = arith.constant 0 : i32
    return %c0_i32, %c0_i32_0 : i32, i32
  }
  func.func @transform_3(%arg0: i32, %arg1: i32) -> (i32, i32) {
    %c0_i32 = arith.constant 0 : i32
    %c0_i32_0 = arith.constant 0 : i32
    %c0_i32_1 = arith.constant 0 : i32
    return %c0_i32, %c0_i32_0 : i32, i32
  }
  func.func @transform_4(%arg0: i32, %arg1: i32) -> (i32, i32) {
    %c0_i32 = arith.constant 0 : i32
    %c0_i32_0 = arith.constant 0 : i32
    %c0_i32_1 = arith.constant 0 : i32
    return %c0_i32, %c0_i32_0 : i32, i32
  }
  func.func @transform_5(%arg0: i32, %arg1: i32) -> (i32, i32) {
    %c0_i32 = arith.constant 0 : i32
    %c0_i32_0 = arith.constant 0 : i32
    %c0_i32_1 = arith.constant 0 : i32
    return %c0_i32, %c0_i32_0 : i32, i32
  }
  func.func @transform_6(%arg0: i32, %arg1: i32) -> (i32, i32) {
    %c0_i32 = arith.constant 0 : i32
    %c0_i32_0 = arith.constant 0 : i32
    %c0_i32_1 = arith.constant 0 : i32
    return %c0_i32, %c0_i32_0 : i32, i32
  }
  func.func @transform_7(%arg0: i32, %arg1: i32) -> (i32, i32) {
    %c0_i32 = arith.constant 0 : i32
    %c0_i32_0 = arith.constant 0 : i32
    return %arg0, %c0_i32 : i32, i32
  }
}

</mosaic_0001>

<llo_original>
// kernel: tpu_custom_call.1
$region0: #{tpu_custom_call.1}
  #allocation0 [shape = 'u32[]', space=smem, size = 0x4, offset = 0x4, fixed_abs, tag = 'smem constant byte address 0x4 - core index']
  #allocation1 [shape = 'u32[144,128]{1,0:T(1,128)}', space=vmem, size = 0x12000, scoped, tag = 'internal scratch']
  #allocation2 [shape = 'f32[16,256]{1,0:T(8,128)}', space=vmem, size = 0x4000, scoped, tag = 'scratch operand']
  %s0 = inlined_call_operand.hbm [shape: f32[16,1024], index: 0, kind: input, shape index: {}]
  %s1 = inlined_call_operand.hbm [shape: f32[256,1024], index: 1, kind: input, shape index: {}]
  %s2 = inlined_call_operand.vmem [shape: f32[1,256], index: 2, kind: input, shape index: {}]
  %s3 = inlined_call_operand.vmem [shape: f32[1,256], index: 3, kind: input, shape index: {}]
  %s4 = inlined_call_operand.vmem [shape: f32[1,256], index: 4, kind: input, shape index: {}]
  %s5 = inlined_call_operand.hbm [shape: f32[128,256], index: 5, kind: input, shape index: {}]
  %s6 = inlined_call_operand.vmem [shape: f32[1,128], index: 6, kind: input, shape index: {}]
  %s7 = inlined_call_operand.hbm [shape: f32[16,128], index: 7, kind: output, shape index: {}]
  %s8 = sld [smem:[#allocation0]]
  $region81: #{tpu_custom_call.1} parent=0
    _
  %s10 = ssub.s32 1, %s8
  %s11 = scalar_select 0, %s10, %s8
  $region1: #{tpu_custom_call.1} parent=0
    #allocation3 [shape = 'u8[65536]{0}', space=vmem, size = 0x10000, scoped, tag = 'input window, operand 0']
    #allocation4 [shape = 's32[2]{0}', space=sflag, size = 0x8, scoped, tag = 'scoped memory for tpu_custom_call.1']
    #allocation5 [shape = 's32[2]{0}', space=sflag, size = 0x8, scoped, tag = 'scoped memory for tpu_custom_call.1']
    #allocation6 [shape = 'u8[1048576]{0}', space=vmem, size = 0x100000, scoped, tag = 'input window, operand 1']
    #allocation7 [shape = 's32[2]{0}', space=sflag, size = 0x8, scoped, tag = 'scoped memory for tpu_custom_call.1']
    #allocation8 [shape = 'u8[131072]{0}', space=vmem, size = 0x20000, scoped, tag = 'input window, operand 5, single buffered']
    #allocation9 [shape = 'u8[8192]{0}', space=vmem, size = 0x2000, scoped, tag = 'output window, operand 0, single buffered']
    %12 = vsyncpa [#allocation4], 0
    %s13 = scalar_lea.sflag [#allocation4], 1
    %14 = vsyncpa %s13, 0
    %15 = vsyncpa [#allocation7], 0
    %s16 = scalar_lea.sflag [#allocation7], 1
    %17 = vsyncpa %s16, 0
    %18 = vsyncpa [#allocation5], 0
    loop: start=0, step=1, limit=4
    $region2: #{tpu_custom_call.1} parent=1 // loop_pre_header
      _
    $region3: #{tpu_custom_call.1} parent=1 // loop_header
      %s20 = sphi 0, %s24
      %p21 = scmp.ge.s32.totalorder %s20, 4
      %s27 = sphi 0, %s39
      %s28 = sphi 0, %s35
      %s29 = sphi 0, %s27
      %s30 = sphi 0, %s28
      %s31 = sphi 0, %s29
      %s32 = sphi 0, %s30
      %s44 = sphi 0, %s46
      %s47 = sphi 0, %s44
      %s48 = sphi 0, %s47
      %s64 = sphi 0, %s48
      %s70 = sphi 0, %s72
      %s73 = sphi 0, %s70
      %s74 = sphi 0, %s73
      %s90 = sphi 0, %s74
      %s94 = sphi 0, %s94
      %s96 = sphi 0, %s94
      %s97 = sphi 0, %s96
      %s111 = sphi 0, %s97
      %s115 = sphi 0, %s115
      %s117 = sphi 0, %s115
      %s118 = sphi 0, %s117
      %s132 = sphi 0, %s118
      %s136 = sphi 0, %s136
      %s138 = sphi 0, %s136
      %s139 = sphi 0, %s138
      %s153 = sphi 0, %s139
      %s157 = sphi 0, %s157
      %s159 = sphi 0, %s157
      %s160 = sphi 0, %s159
      %s174 = sphi 0, %s160
      %s178 = sphi 0, %s178
      %s180 = sphi 0, %s178
      %s181 = sphi 0, %s180
      %s195 = sphi 0, %s181
      %s201 = sphi 0, %s203
      %s204 = sphi 0, %s201
      %s205 = sphi 0, %s204
      %s221 = sphi 0, %s205
    $region4: #{tpu_custom_call.1} parent=1 // loop_header_branch
      %23 = sbr.rel (%p21) target = $region8
    $region5: #{tpu_custom_call.1} parent=1 // loop_body
      %s25 = ssub.s32 %s20, 1
      %s26 = ssub.s32 %s20, 2
      %s33 = sadd.s32 1, %s28
      %p34 = scmp.ge.s32.totalorder %s33, 2
      %s35 = scalar_select %p34, 0, %s33
      %s36 = sadd.s32 1, %s27
      %s37 = scalar_select %p34, %s36, %s27
      %p38 = scmp.ge.s32.totalorder %s37, 1
      %s39 = scalar_select %p38, 0, %s37
      %s40 = ssub.s32 %s27, %s39
      %s41 = ssub.s32 %s28, %s35
      %s42 = sor.u32 %s40, %s41
      %p43 = scmp.eq.s32.totalorder %s42, 0
      %s45 = sadd.s32 %s44, 1
      %s46 = scalar_select %p43, %s44, %s45
      %p49 = pneg %p43
      %p50 = scmp.eq.s32.totalorder %s20, 1
      %p51 = por %p49, %p50
      %p52 = scmp.ne.s32.totalorder %s44, %s47
      %p53 = scmp.eq.s32.totalorder %s20, 0
      %p54 = por %p52, %p53
      %p55 = scmp.ne.s32.totalorder %s44, %s47
      %p56 = scmp.eq.s32.totalorder %s25, 1
      %p57 = por %p55, %p56
      %p58 = scmp.ne.s32.totalorder %s47, %s48
      %p59 = scmp.eq.s32.totalorder %s25, 0
      %p60 = por %p58, %p59
      %p61 = scmp.ne.s32.totalorder %s47, %s48
      %p62 = scmp.eq.s32.totalorder %s26, 1
      %p63 = por %p61, %p62
      %p65 = scmp.ne.s32.totalorder %s48, %s64
      %p66 = scmp.eq.s32.totalorder %s26, 0
      %p67 = por %p65, %p66
      %s68 = ssub.s32 %s28, %s35
      %p69 = scmp.eq.s32.totalorder %s68, 0
      %s71 = sadd.s32 %s70, 1
      %s72 = scalar_select %p69, %s70, %s71
      %p75 = pneg %p69
      %p76 = scmp.eq.s32.totalorder %s20, 1
      %p77 = por %p75, %p76
      %p78 = scmp.ne.s32.totalorder %s70, %s73
      %p79 = scmp.eq.s32.totalorder %s20, 0
      %p80 = por %p78, %p79
      %p81 = scmp.ne.s32.totalorder %s70, %s73
      %p82 = scmp.eq.s32.totalorder %s25, 1
      %p83 = por %p81, %p82
      %p84 = scmp.ne.s32.totalorder %s73, %s74
      %p85 = scmp.eq.s32.totalorder %s25, 0
      %p86 = por %p84, %p85
      %p87 = scmp.ne.s32.totalorder %s73, %s74
      %p88 = scmp.eq.s32.totalorder %s26, 1
      %p89 = por %p87, %p88
      %p91 = scmp.ne.s32.totalorder %s74, %s90
      %p92 = scmp.eq.s32.totalorder %s26, 0
      %p93 = por %p91, %p92
      %s95 = sadd.s32 %s94, 1
      %p98 = scmp.eq.s32.totalorder %s20, 1
      %p99 = scmp.ne.s32.totalorder %s94, %s96
      %p100 = scmp.eq.s32.totalorder %s20, 0
      %p101 = por %p99, %p100
      %p102 = scmp.ne.s32.totalorder %s94, %s96
      %p103 = scmp.eq.s32.totalorder %s25, 1
      %p104 = por %p102, %p103
      %p105 = scmp.ne.s32.totalorder %s96, %s97
      %p106 = scmp.eq.s32.totalorder %s25, 0
      %p107 = por %p105, %p106
      %p108 = scmp.ne.s32.totalorder %s96, %s97
      %p109 = scmp.eq.s32.totalorder %s26, 1
      %p110 = por %p108, %p109
      %p112 = scmp.ne.s32.totalorder %s97, %s111
      %p113 = scmp.eq.s32.totalorder %s26, 0
      %p114 = por %p112, %p113
      %s116 = sadd.s32 %s115, 1
      %p119 = scmp.eq.s32.totalorder %s20, 1
      %p120 = scmp.ne.s32.totalorder %s115, %s117
      %p121 = scmp.eq.s32.totalorder %s20, 0
      %p122 = por %p120, %p121
      %p123 = scmp.ne.s32.totalorder %s115, %s117
      %p124 = scmp.eq.s32.totalorder %s25, 1
      %p125 = por %p123, %p124
      %p126 = scmp.ne.s32.totalorder %s117, %s118
      %p127 = scmp.eq.s32.totalorder %s25, 0
      %p128 = por %p126, %p127
      %p129 = scmp.ne.s32.totalorder %s117, %s118
      %p130 = scmp.eq.s32.totalorder %s26, 1
      %p131 = por %p129, %p130
      %p133 = scmp.ne.s32.totalorder %s118, %s132
      %p134 = scmp.eq.s32.totalorder %s26, 0
      %p135 = por %p133, %p134
      %s137 = sadd.s32 %s136, 1
      %p140 = scmp.eq.s32.totalorder %s20, 1
      %p141 = scmp.ne.s32.totalorder %s136, %s138
      %p142 = scmp.eq.s32.totalorder %s20, 0
      %p143 = por %p141, %p142
      %p144 = scmp.ne.s32.totalorder %s136, %s138
      %p145 = scmp.eq.s32.totalorder %s25, 1
      %p146 = por %p144, %p145
      %p147 = scmp.ne.s32.totalorder %s138, %s139
      %p148 = scmp.eq.s32.totalorder %s25, 0
      %p149 = por %p147, %p148
      %p150 = scmp.ne.s32.totalorder %s138, %s139
      %p151 = scmp.eq.s32.totalorder %s26, 1
      %p152 = por %p150, %p151
      %p154 = scmp.ne.s32.totalorder %s139, %s153
      %p155 = scmp.eq.s32.totalorder %s26, 0
      %p156 = por %p154, %p155
      %s158 = sadd.s32 %s157, 1
      %p161 = scmp.eq.s32.totalorder %s20, 1
      %p162 = scmp.ne.s32.totalorder %s157, %s159
      %p163 = scmp.eq.s32.totalorder %s20, 0
      %p164 = por %p162, %p163
      %p165 = scmp.ne.s32.totalorder %s157, %s159
      %p166 = scmp.eq.s32.totalorder %s25, 1
      %p167 = por %p165, %p166
      %p168 = scmp.ne.s32.totalorder %s159, %s160
      %p169 = scmp.eq.s32.totalorder %s25, 0
      %p170 = por %p168, %p169
      %p171 = scmp.ne.s32.totalorder %s159, %s160
      %p172 = scmp.eq.s32.totalorder %s26, 1
      %p173 = por %p171, %p172
      %p175 = scmp.ne.s32.totalorder %s160, %s174
      %p176 = scmp.eq.s32.totalorder %s26, 0
      %p177 = por %p175, %p176
      %s179 = sadd.s32 %s178, 1
      %p182 = scmp.eq.s32.totalorder %s20, 1
      %p183 = scmp.ne.s32.totalorder %s178, %s180
      %p184 = scmp.eq.s32.totalorder %s20, 0
      %p185 = por %p183, %p184
      %p186 = scmp.ne.s32.totalorder %s178, %s180
      %p187 = scmp.eq.s32.totalorder %s25, 1
      %p188 = por %p186, %p187
      %p189 = scmp.ne.s32.totalorder %s180, %s181
      %p190 = scmp.eq.s32.totalorder %s25, 0
      %p191 = por %p189, %p190
      %p192 = scmp.ne.s32.totalorder %s180, %s181
      %p193 = scmp.eq.s32.totalorder %s26, 1
      %p194 = por %p192, %p193
      %p196 = scmp.ne.s32.totalorder %s181, %s195
      %p197 = scmp.eq.s32.totalorder %s26, 0
      %p198 = por %p196, %p197
      %s199 = ssub.s32 %s27, %s39
      %p200 = scmp.eq.s32.totalorder %s199, 0
      %s202 = sadd.s32 %s201, 1
      %s203 = scalar_select %p200, %s201, %s202
      %p206 = pneg %p200
      %p207 = scmp.eq.s32.totalorder %s20, 1
      %p208 = por %p206, %p207
      %p209 = scmp.ne.s32.totalorder %s201, %s204
      %p210 = scmp.eq.s32.totalorder %s20, 0
      %p211 = por %p209, %p210
      %p212 = scmp.ne.s32.totalorder %s201, %s204
      %p213 = scmp.eq.s32.totalorder %s25, 1
      %p214 = por %p212, %p213
      %p215 = scmp.ne.s32.totalorder %s204, %s205
      %p216 = scmp.eq.s32.totalorder %s25, 0
      %p217 = por %p215, %p216
      %p218 = scmp.ne.s32.totalorder %s204, %s205
      %p219 = scmp.eq.s32.totalorder %s26, 1
      %p220 = por %p218, %p219
      %p222 = scmp.ne.s32.totalorder %s205, %s221
      %p223 = scmp.eq.s32.totalorder %s26, 0
      %p224 = por %p222, %p223
      %p225 = scmp.le.s32.totalorder 1, %s20
      %p226 = scmp.lt.s32.totalorder %s20, 3
      %p227 = pnand %p225, %p226
      %p228 = pneg %p227
      // Predicated region
      $region9: #{tpu_custom_call.1} parent=5 // pred_check
        _
      $region10: #{tpu_custom_call.1} parent=5 // pred_check_branch
        %230 = sbr.rel (%p227) target = $region12
      $region11: #{tpu_custom_call.1} parent=5 // pred_region
        %s231 = ssub.s32 %s20, 1
        // Predicated region
        $region13: #{tpu_custom_call.1} parent=11 // pred_check
          %p232 = pneg %p107
        $region14: #{tpu_custom_call.1} parent=11 // pred_check_branch
          %234 = sbr.rel (%p232) target = $region16
        $region15: #{tpu_custom_call.1} parent=11 // pred_region
          _
        $region16: #{tpu_custom_call.1} parent=11 // pred_fallthru
          _
        // Predicated region
        $region17: #{tpu_custom_call.1} parent=11 // pred_check
          %p235 = pneg %p128
        $region18: #{tpu_custom_call.1} parent=11 // pred_check_branch
          %237 = sbr.rel (%p235) target = $region20
        $region19: #{tpu_custom_call.1} parent=11 // pred_region
          _
        $region20: #{tpu_custom_call.1} parent=11 // pred_fallthru
          _
        // Predicated region
        $region21: #{tpu_custom_call.1} parent=11 // pred_check
          %p238 = pneg %p149
        $region22: #{tpu_custom_call.1} parent=11 // pred_check_branch
          %240 = sbr.rel (%p238) target = $region24
        $region23: #{tpu_custom_call.1} parent=11 // pred_region
          _
        $region24: #{tpu_custom_call.1} parent=11 // pred_fallthru
          _
        // Predicated region
        $region25: #{tpu_custom_call.1} parent=11 // pred_check
          %p241 = pneg %p170
        $region26: #{tpu_custom_call.1} parent=11 // pred_check_branch
          %243 = sbr.rel (%p241) target = $region28
        $region27: #{tpu_custom_call.1} parent=11 // pred_region
          %s245 = ssub.s32 4096, 4096
          %246 = vsyncadd [#allocation7], %s245
          %s247 = sshll.u32 [#allocation8], 4
          %s248 = int_to_ptr.vmem [resolvable:$true] %s247
          %253 = dma.hbm_to_vmem [thread:$0]  %s5, 4096, %s248, [#allocation7], 256, 256, 16
        $region28: #{tpu_custom_call.1} parent=11 // pred_fallthru
          _
        // Predicated region
        $region29: #{tpu_custom_call.1} parent=11 // pred_check
          %p254 = pneg %p191
        $region30: #{tpu_custom_call.1} parent=11 // pred_check_branch
          %256 = sbr.rel (%p254) target = $region32
        $region31: #{tpu_custom_call.1} parent=11 // pred_region
          _
        $region32: #{tpu_custom_call.1} parent=11 // pred_fallthru
          _
      $region12: #{tpu_custom_call.1} parent=5 // pred_fallthru
        _
      %p257 = scmp.lt.s32.totalorder %s20, 2
      // Predicated region
      $region33: #{tpu_custom_call.1} parent=5 // pred_check
        %p258 = pneg %p257
      $region34: #{tpu_custom_call.1} parent=5 // pred_check_branch
        %260 = sbr.rel (%p258) target = $region36
      $region35: #{tpu_custom_call.1} parent=5 // pred_region
        // Predicated region
        $region37: #{tpu_custom_call.1} parent=35 // pred_check
          %p261 = pneg %p54
        $region38: #{tpu_custom_call.1} parent=35 // pred_check_branch
          %263 = sbr.rel (%p261) target = $region40
        $region39: #{tpu_custom_call.1} parent=35 // pred_region
          %s264 = sand.u32 %s44, 1
          %s265 = scalar_lea.sflag [#allocation4], %s264
          %s266 = sand.u32 %s44, 1
          %s267 = smul.addr %s266, 64
          %s268 = scalar_lea.vmem [#allocation3], %s267
          %s269 = smul.u32 2, %s27
          %s270 = smul.u32 4, %s28
          %s272 = ssub.s32 1024, 1024
          %273 = vsyncadd %s265, %s272
          %s274 = smul.addr %s269, 8
          %s275 = sadd.s32 %s270, %s274
          %s276 = smul.addr %s275, 128
          %s277 = scalar_lea.hbm %s0, %s276
          %s278 = sshll.u32 %s268, 4
          %s279 = int_to_ptr.vmem [resolvable:$true] %s278
          %284 = dma.hbm_to_vmem [thread:$0]  %s277, 1024, %s279, %s265, 1024, 512, 32
        $region40: #{tpu_custom_call.1} parent=35 // pred_fallthru
          _
        // Predicated region
        $region41: #{tpu_custom_call.1} parent=35 // pred_check
          %p285 = pneg %p80
        $region42: #{tpu_custom_call.1} parent=35 // pred_check_branch
          %287 = sbr.rel (%p285) target = $region44
        $region43: #{tpu_custom_call.1} parent=35 // pred_region
          %s288 = sand.u32 %s20, 1
          %s289 = scalar_lea.sflag [#allocation7], %s288
          %s290 = sand.u32 %s70, 1
          %s291 = smul.addr %s290, 1024
          %s292 = scalar_lea.vmem [#allocation6], %s291
          %s293 = smul.u32 4, %s28
          %s295 = ssub.s32 16384, 16384
          %296 = vsyncadd %s289, %s295
          %s297 = smul.addr %s293, 128
          %s298 = scalar_lea.hbm %s1, %s297
          %s299 = sshll.u32 %s292, 4
          %s300 = int_to_ptr.vmem [resolvable:$true] %s299
          %305 = dma.hbm_to_vmem [thread:$0]  %s298, 16384, %s300, %s289, 1024, 512, 32
        $region44: #{tpu_custom_call.1} parent=35 // pred_fallthru
          _
      $region36: #{tpu_custom_call.1} parent=5 // pred_fallthru
        _
      %p306 = scmp.le.s32.totalorder 1, %s20
      %p307 = scmp.lt.s32.totalorder %s20, 3
      %p308 = pnand %p306, %p307
      %p309 = pneg %p308
      // Predicated region
      $region45: #{tpu_custom_call.1} parent=5 // pred_check
        _
      $region46: #{tpu_custom_call.1} parent=5 // pred_check_branch
        %311 = sbr.rel (%p308) target = $region48
      $region47: #{tpu_custom_call.1} parent=5 // pred_region
        %s312 = ssub.s32 %s20, 1
        %s313 = sand.u32 %s47, 1
        %s314 = scalar_lea.sflag [#allocation4], %s313
        %s315 = sand.u32 %s47, 1
        %s316 = smul.addr %s315, 64
        %s317 = scalar_lea.vmem [#allocation3], %s316
        // Predicated region
        $region49: #{tpu_custom_call.1} parent=47 // pred_check
          %p318 = pneg %p60
        $region50: #{tpu_custom_call.1} parent=47 // pred_check_branch
          %320 = sbr.rel (%p318) target = $region52
        $region51: #{tpu_custom_call.1} parent=47 // pred_region
          %321 = dma.done %s314, 1024
        $region52: #{tpu_custom_call.1} parent=47 // pred_fallthru
          _
        %s322 = sand.u32 %s25, 1
        %s323 = scalar_lea.sflag [#allocation7], %s322
        %s324 = sand.u32 %s73, 1
        %s325 = smul.addr %s324, 1024
        %s326 = scalar_lea.vmem [#allocation6], %s325
        // Predicated region
        $region53: #{tpu_custom_call.1} parent=47 // pred_check
          %p327 = pneg %p86
        $region54: #{tpu_custom_call.1} parent=47 // pred_check_branch
          %329 = sbr.rel (%p327) target = $region56
        $region55: #{tpu_custom_call.1} parent=47 // pred_region
          %330 = dma.done %s323, 16384
        $region56: #{tpu_custom_call.1} parent=47 // pred_fallthru
          _
        // Predicated region
        $region57: #{tpu_custom_call.1} parent=47 // pred_check
          %p331 = pneg %p170
        $region58: #{tpu_custom_call.1} parent=47 // pred_check_branch
          %333 = sbr.rel (%p331) target = $region60
        $region59: #{tpu_custom_call.1} parent=47 // pred_region
          %334 = dma.done [#allocation7], 4096
        $region60: #{tpu_custom_call.1} parent=47 // pred_fallthru
          _
        %s335 = sand.u32 %s47, 1
        %s336 = scalar_lea.sflag [#allocation4], %s335
        %s337 = sand.u32 %s47, 1
        %s338 = smul.addr %s337, 64
        %s339 = scalar_lea.vmem [#allocation3], %s338
        %p340 = pneg %p60
        %p341 = pneg %p57
        %s342 = sand.u32 %s25, 1
        %s343 = scalar_lea.sflag [#allocation7], %s342
        %s344 = sand.u32 %s73, 1
        %s345 = smul.addr %s344, 1024
        %s346 = scalar_lea.vmem [#allocation6], %s345
        %p347 = pneg %p86
        %p348 = pneg %p83
        %p349 = pneg %p107
        %p350 = pneg %p104
        %p351 = pneg %p128
        %p352 = pneg %p125
        %p353 = pneg %p149
        %p354 = pneg %p146
        %p355 = pneg %p170
        %p356 = pneg %p167
        %p357 = pneg %p191
        %p358 = pneg %p188
        %p359 = pneg %p217
        %p360 = pneg %p214
        %s361 = smul.u32 2, %s29
        %s362 = smul.u32 4, %s30
        %s363 = smul.u32 4, %s30
        %s364 = smul.u32 2, %s29
        %p365 = scmp.eq.s32.totalorder %s30, 0
        // Predicated region
        $region61: #{tpu_custom_call.1} parent=47 // pred_check
          %p366 = pneg %p365
        $region62: #{tpu_custom_call.1} parent=47 // pred_check_branch
          %368 = sbr.rel (%p366) target = $region64
        $region63: #{tpu_custom_call.1} parent=47 // pred_region
          %369 = vst [vmem:[#allocation2] sm:$0xff] 0.0
          %370 = vst [vmem:[#allocation2 + $0x8] sm:$0xff] 0.0
          %371 = vst [vmem:[#allocation2 + $0x10] sm:$0xff] 0.0
          %372 = vst [vmem:[#allocation2 + $0x18] sm:$0xff] 0.0
        $region64: #{tpu_custom_call.1} parent=47 // pred_fallthru
          _
        %v373 = vld [vmem:[#allocation2] sm:$0xff]
        %v374 = vld [vmem:[#allocation2 + $0x8] sm:$0xff]
        %v375 = vld [vmem:[#allocation2 + $0x10] sm:$0xff]
        %v376 = vld [vmem:[#allocation2 + $0x18] sm:$0xff]
        %v377 = vld [vmem:[%s317] sm:$0xff]
        %v378 = vld [vmem:[%s317 + $0x8] sm:$0xff]
        %v379 = vld [vmem:[%s317 + $0x10] sm:$0xff]
        %v380 = vld [vmem:[%s317 + $0x18] sm:$0xff]
        %v381 = vld [vmem:[%s317 + $0x20] sm:$0xff]
        %v382 = vld [vmem:[%s317 + $0x28] sm:$0xff]
        %v383 = vld [vmem:[%s317 + $0x30] sm:$0xff]
        %v384 = vld [vmem:[%s317 + $0x38] sm:$0xff]
        %v385 = vld [vmem:[%s326] sm:$0xff]
        %v386 = vld [vmem:[%s326 + $0x8] sm:$0xff]
        %v387 = vld [vmem:[%s326 + $0x10] sm:$0xff]
        %v388 = vld [vmem:[%s326 + $0x18] sm:$0xff]
        %v389 = vld [vmem:[%s326 + $0x20] sm:$0xff]
        %v390 = vld [vmem:[%s326 + $0x28] sm:$0xff]
        %v391 = vld [vmem:[%s326 + $0x30] sm:$0xff]
        %v392 = vld [vmem:[%s326 + $0x38] sm:$0xff]
        %v393 = vld [vmem:[%s326 + $0x40] sm:$0xff]
        %v394 = vld [vmem:[%s326 + $0x48] sm:$0xff]
        %v395 = vld [vmem:[%s326 + $0x50] sm:$0xff]
        %v396 = vld [vmem:[%s326 + $0x58] sm:$0xff]
        %v397 = vld [vmem:[%s326 + $0x60] sm:$0xff]
        %v398 = vld [vmem:[%s326 + $0x68] sm:$0xff]
        %v399 = vld [vmem:[%s326 + $0x70] sm:$0xff]
        %v400 = vld [vmem:[%s326 + $0x78] sm:$0xff]
        %v401 = vld [vmem:[%s326 + $0x80] sm:$0xff]
        %v402 = vld [vmem:[%s326 + $0x88] sm:$0xff]
        %v403 = vld [vmem:[%s326 + $0x90] sm:$0xff]
        %v404 = vld [vmem:[%s326 + $0x98] sm:$0xff]
        %v405 = vld [vmem:[%s326 + $0xa0] sm:$0xff]
        %v406 = vld [vmem:[%s326 + $0xa8] sm:$0xff]
        %v407 = vld [vmem:[%s326 + $0xb0] sm:$0xff]
        %v408 = vld [vmem:[%s326 + $0xb8] sm:$0xff]
        %v409 = vld [vmem:[%s326 + $0xc0] sm:$0xff]
        %v410 = vld [vmem:[%s326 + $0xc8] sm:$0xff]
        %v411 = vld [vmem:[%s326 + $0xd0] sm:$0xff]
        %v412 = vld [vmem:[%s326 + $0xd8] sm:$0xff]
        %v413 = vld [vmem:[%s326 + $0xe0] sm:$0xff]
        %v414 = vld [vmem:[%s326 + $0xe8] sm:$0xff]
        %v415 = vld [vmem:[%s326 + $0xf0] sm:$0xff]
        %v416 = vld [vmem:[%s326 + $0xf8] sm:$0xff]
        %v417 = vld [vmem:[%s326 + $0x100] sm:$0xff]
        %v418 = vld [vmem:[%s326 + $0x108] sm:$0xff]
        %v419 = vld [vmem:[%s326 + $0x110] sm:$0xff]
        %v420 = vld [vmem:[%s326 + $0x118] sm:$0xff]
        %v421 = vld [vmem:[%s326 + $0x120] sm:$0xff]
        %v422 = vld [vmem:[%s326 + $0x128] sm:$0xff]
        %v423 = vld [vmem:[%s326 + $0x130] sm:$0xff]
        %v424 = vld [vmem:[%s326 + $0x138] sm:$0xff]
        %v425 = vld [vmem:[%s326 + $0x140] sm:$0xff]
        %v426 = vld [vmem:[%s326 + $0x148] sm:$0xff]
        %v427 = vld [vmem:[%s326 + $0x150] sm:$0xff]
        %v428 = vld [vmem:[%s326 + $0x158] sm:$0xff]
        %v429 = vld [vmem:[%s326 + $0x160] sm:$0xff]
        %v430 = vld [vmem:[%s326 + $0x168] sm:$0xff]
        %v431 = vld [vmem:[%s326 + $0x170] sm:$0xff]
        %v432 = vld [vmem:[%s326 + $0x178] sm:$0xff]
        %v433 = vld [vmem:[%s326 + $0x180] sm:$0xff]
        %v434 = vld [vmem:[%s326 + $0x188] sm:$0xff]
        %v435 = vld [vmem:[%s326 + $0x190] sm:$0xff]
        %v436 = vld [vmem:[%s326 + $0x198] sm:$0xff]
        %v437 = vld [vmem:[%s326 + $0x1a0] sm:$0xff]
        %v438 = vld [vmem:[%s326 + $0x1a8] sm:$0xff]
        %v439 = vld [vmem:[%s326 + $0x1b0] sm:$0xff]
        %v440 = vld [vmem:[%s326 + $0x1b8] sm:$0xff]
        %v441 = vld [vmem:[%s326 + $0x1c0] sm:$0xff]
        %v442 = vld [vmem:[%s326 + $0x1c8] sm:$0xff]
        %v443 = vld [vmem:[%s326 + $0x1d0] sm:$0xff]
        %v444 = vld [vmem:[%s326 + $0x1d8] sm:$0xff]
        %v445 = vld [vmem:[%s326 + $0x1e0] sm:$0xff]
        %v446 = vld [vmem:[%s326 + $0x1e8] sm:$0xff]
        %v447 = vld [vmem:[%s326 + $0x1f0] sm:$0xff]
        %v448 = vld [vmem:[%s326 + $0x1f8] sm:$0xff]
        %v449 = vld [vmem:[%s326 + $0x200] sm:$0xff]
        %v450 = vld [vmem:[%s326 + $0x208] sm:$0xff]
        %v451 = vld [vmem:[%s326 + $0x210] sm:$0xff]
        %v452 = vld [vmem:[%s326 + $0x218] sm:$0xff]
        %v453 = vld [vmem:[%s326 + $0x220] sm:$0xff]
        %v454 = vld [vmem:[%s326 + $0x228] sm:$0xff]
        %v455 = vld [vmem:[%s326 + $0x230] sm:$0xff]
        %v456 = vld [vmem:[%s326 + $0x238] sm:$0xff]
        %v457 = vld [vmem:[%s326 + $0x240] sm:$0xff]
        %v458 = vld [vmem:[%s326 + $0x248] sm:$0xff]
        %v459 = vld [vmem:[%s326 + $0x250] sm:$0xff]
        %v460 = vld [vmem:[%s326 + $0x258] sm:$0xff]
        %v461 = vld [vmem:[%s326 + $0x260] sm:$0xff]
        %v462 = vld [vmem:[%s326 + $0x268] sm:$0xff]
        %v463 = vld [vmem:[%s326 + $0x270] sm:$0xff]
        %v464 = vld [vmem:[%s326 + $0x278] sm:$0xff]
        %v465 = vld [vmem:[%s326 + $0x280] sm:$0xff]
        %v466 = vld [vmem:[%s326 + $0x288] sm:$0xff]
        %v467 = vld [vmem:[%s326 + $0x290] sm:$0xff]
        %v468 = vld [vmem:[%s326 + $0x298] sm:$0xff]
        %v469 = vld [vmem:[%s326 + $0x2a0] sm:$0xff]
        %v470 = vld [vmem:[%s326 + $0x2a8] sm:$0xff]
        %v471 = vld [vmem:[%s326 + $0x2b0] sm:$0xff]
        %v472 = vld [vmem:[%s326 + $0x2b8] sm:$0xff]
        %v473 = vld [vmem:[%s326 + $0x2c0] sm:$0xff]
        %v474 = vld [vmem:[%s326 + $0x2c8] sm:$0xff]
        %v475 = vld [vmem:[%s326 + $0x2d0] sm:$0xff]
        %v476 = vld [vmem:[%s326 + $0x2d8] sm:$0xff]
        %v477 = vld [vmem:[%s326 + $0x2e0] sm:$0xff]
        %v478 = vld [vmem:[%s326 + $0x2e8] sm:$0xff]
        %v479 = vld [vmem:[%s326 + $0x2f0] sm:$0xff]
        %v480 = vld [vmem:[%s326 + $0x2f8] sm:$0xff]
        %v481 = vld [vmem:[%s326 + $0x300] sm:$0xff]
        %v482 = vld [vmem:[%s326 + $0x308] sm:$0xff]
        %v483 = vld [vmem:[%s326 + $0x310] sm:$0xff]
        %v484 = vld [vmem:[%s326 + $0x318] sm:$0xff]
        %v485 = vld [vmem:[%s326 + $0x320] sm:$0xff]
        %v486 = vld [vmem:[%s326 + $0x328] sm:$0xff]
        %v487 = vld [vmem:[%s326 + $0x330] sm:$0xff]
        %v488 = vld [vmem:[%s326 + $0x338] sm:$0xff]
        %v489 = vld [vmem:[%s326 + $0x340] sm:$0xff]
        %v490 = vld [vmem:[%s326 + $0x348] sm:$0xff]
        %v491 = vld [vmem:[%s326 + $0x350] sm:$0xff]
        %v492 = vld [vmem:[%s326 + $0x358] sm:$0xff]
        %v493 = vld [vmem:[%s326 + $0x360] sm:$0xff]
        %v494 = vld [vmem:[%s326 + $0x368] sm:$0xff]
        %v495 = vld [vmem:[%s326 + $0x370] sm:$0xff]
        %v496 = vld [vmem:[%s326 + $0x378] sm:$0xff]
        %v497 = vld [vmem:[%s326 + $0x380] sm:$0xff]
        %v498 = vld [vmem:[%s326 + $0x388] sm:$0xff]
        %v499 = vld [vmem:[%s326 + $0x390] sm:$0xff]
        %v500 = vld [vmem:[%s326 + $0x398] sm:$0xff]
        %v501 = vld [vmem:[%s326 + $0x3a0] sm:$0xff]
        %v502 = vld [vmem:[%s326 + $0x3a8] sm:$0xff]
        %v503 = vld [vmem:[%s326 + $0x3b0] sm:$0xff]
        %v504 = vld [vmem:[%s326 + $0x3b8] sm:$0xff]
        %v505 = vld [vmem:[%s326 + $0x3c0] sm:$0xff]
        %v506 = vld [vmem:[%s326 + $0x3c8] sm:$0xff]
        %v507 = vld [vmem:[%s326 + $0x3d0] sm:$0xff]
        %v508 = vld [vmem:[%s326 + $0x3d8] sm:$0xff]
        %v509 = vld [vmem:[%s326 + $0x3e0] sm:$0xff]
        %v510 = vld [vmem:[%s326 + $0x3e8] sm:$0xff]
        %v511 = vld [vmem:[%s326 + $0x3f0] sm:$0xff]
        %v512 = vld [vmem:[%s326 + $0x3f8] sm:$0xff]
        %513 = vmatprep.subr.mxu0 %v446
        %514 = vmatpush1.xpose.msra.mxu0 %v445
        %515 = vmatprep.subr.mxu0 %v442
        %516 = vmatpush1.xpose.msra.mxu0 %v441
        %517 = vmatprep.subr.mxu0 %v438
        %518 = vmatpush1.xpose.msra.mxu0 %v437
        %519 = vmatprep.subr.mxu0 %v434
        %520 = vmatpush1.xpose.msra.mxu0 %v433
        %521 = vmatprep.subr.mxu0 %v430
        %522 = vmatpush1.xpose.msra.mxu0 %v429
        %523 = vmatprep.subr.mxu0 %v426
        %524 = vmatpush1.xpose.msra.mxu0 %v425
        %525 = vmatprep.subr.mxu0 %v422
        %526 = vmatpush1.xpose.msra.mxu0 %v421
        %527 = vmatprep.subr.mxu0 %v418
        %528 = vmatpush1.xpose.msra.mxu0 %v417
        %529 = vmatprep.subr.mxu0 %v414
        %530 = vmatpush1.xpose.msra.mxu0 %v413
        %531 = vmatprep.subr.mxu0 %v410
        %532 = vmatpush1.xpose.msra.mxu0 %v409
        %533 = vmatprep.subr.mxu0 %v406
        %534 = vmatpush1.xpose.msra.mxu0 %v405
        %535 = vmatprep.subr.mxu0 %v402
        %536 = vmatpush1.xpose.msra.mxu0 %v401
        %537 = vmatprep.subr.mxu0 %v398
        %538 = vmatpush1.xpose.msra.mxu0 %v397
        %539 = vmatprep.subr.mxu0 %v394
        %540 = vmatpush1.xpose.msra.mxu0 %v393
        %541 = vmatprep.subr.mxu0 %v390
        %542 = vmatpush1.xpose.msra.mxu0 %v389
        %543 = vmatprep.subr.mxu0 %v386
        %544 = vmatpush1.xpose.msra.mxu0 %v385
        %545 = vmatprep.subr.mxu0 %v510
        %546 = vmatpush2.xpose.msra.mxu0 %v509
        %547 = vmatprep.subr.mxu0 %v506
        %548 = vmatpush2.xpose.msra.mxu0 %v505
        %549 = vmatprep.subr.mxu0 %v502
        %550 = vmatpush2.xpose.msra.mxu0 %v501
        %551 = vmatprep.subr.mxu0 %v498
        %552 = vmatpush2.xpose.msra.mxu0 %v497
        %553 = vmatprep.subr.mxu0 %v494
        %554 = vmatpush2.xpose.msra.mxu0 %v493
        %555 = vmatprep.subr.mxu0 %v490
        %556 = vmatpush2.xpose.msra.mxu0 %v489
        %557 = vmatprep.subr.mxu0 %v486
        %558 = vmatpush2.xpose.msra.mxu0 %v485
        %559 = vmatprep.subr.mxu0 %v482
        %560 = vmatpush2.xpose.msra.mxu0 %v481
        %561 = vmatprep.subr.mxu0 %v478
        %562 = vmatpush2.xpose.msra.mxu0 %v477
        %563 = vmatprep.subr.mxu0 %v474
        %564 = vmatpush2.xpose.msra.mxu0 %v473
        %565 = vmatprep.subr.mxu0 %v470
        %566 = vmatpush2.xpose.msra.mxu0 %v469
        %567 = vmatprep.subr.mxu0 %v466
        %568 = vmatpush2.xpose.msra.mxu0 %v465
        %569 = vmatprep.subr.mxu0 %v462
        %570 = vmatpush2.xpose.msra.mxu0 %v461
        %571 = vmatprep.subr.mxu0 %v458
        %572 = vmatpush2.xpose.msra.mxu0 %v457
        %573 = vmatprep.subr.mxu0 %v454
        %574 = vmatpush2.xpose.msra.mxu0 %v453
        %575 = vmatprep.subr.mxu0 %v450
        %576 = vmatpush2.xpose.msra.mxu0 %v449
        %577 = vmatprep.mubr.f32.mxu0 %v378
        %578 = vmatmul.mubr.f32.gmra.mxu0 %v377
        %v579 = vpop.f32.mrf.mxu0
        %v580 = vadd.f32 0.0, %v579
        %v581 = vpop.f32.mrf.mxu0
        %v582 = vadd.f32 0.0, %v581
        %583 = vmatprep.mubr.f32.mxu0 %v382
        %584 = vmatmul.mubr.f32.gmra.mxu0 %v381
        %v585 = vpop.f32.mrf.mxu0
        %v586 = vadd.f32 0.0, %v585
        %v587 = vpop.f32.mrf.mxu0
        %v588 = vadd.f32 0.0, %v587
        %589 = vdwg.mxu0
        %590 = vmatprep.subr.mxu0 %v448
        %591 = vmatpush1.xpose.msra.mxu0 %v447
        %592 = vmatprep.subr.mxu0 %v444
        %593 = vmatpush1.xpose.msra.mxu0 %v443
        %594 = vmatprep.subr.mxu0 %v440
        %595 = vmatpush1.xpose.msra.mxu0 %v439
        %596 = vmatprep.subr.mxu0 %v436
        %597 = vmatpush1.xpose.msra.mxu0 %v435
        %598 = vmatprep.subr.mxu0 %v432
        %599 = vmatpush1.xpose.msra.mxu0 %v431
        %600 = vmatprep.subr.mxu0 %v428
        %601 = vmatpush1.xpose.msra.mxu0 %v427
        %602 = vmatprep.subr.mxu0 %v424
        %603 = vmatpush1.xpose.msra.mxu0 %v423
        %604 = vmatprep.subr.mxu0 %v420
        %605 = vmatpush1.xpose.msra.mxu0 %v419
        %606 = vmatprep.subr.mxu0 %v416
        %607 = vmatpush1.xpose.msra.mxu0 %v415
        %608 = vmatprep.subr.mxu0 %v412
        %609 = vmatpush1.xpose.msra.mxu0 %v411
        %610 = vmatprep.subr.mxu0 %v408
        %611 = vmatpush1.xpose.msra.mxu0 %v407
        %612 = vmatprep.subr.mxu0 %v404
        %613 = vmatpush1.xpose.msra.mxu0 %v403
        %614 = vmatprep.subr.mxu0 %v400
        %615 = vmatpush1.xpose.msra.mxu0 %v399
        %616 = vmatprep.subr.mxu0 %v396
        %617 = vmatpush1.xpose.msra.mxu0 %v395
        %618 = vmatprep.subr.mxu0 %v392
        %619 = vmatpush1.xpose.msra.mxu0 %v391
        %620 = vmatprep.subr.mxu0 %v388
        %621 = vmatpush1.xpose.msra.mxu0 %v387
        %622 = vmatprep.subr.mxu0 %v512
        %623 = vmatpush2.xpose.msra.mxu0 %v511
        %624 = vmatprep.subr.mxu0 %v508
        %625 = vmatpush2.xpose.msra.mxu0 %v507
        %626 = vmatprep.subr.mxu0 %v504
        %627 = vmatpush2.xpose.msra.mxu0 %v503
        %628 = vmatprep.subr.mxu0 %v500
        %629 = vmatpush2.xpose.msra.mxu0 %v499
        %630 = vmatprep.subr.mxu0 %v496
        %631 = vmatpush2.xpose.msra.mxu0 %v495
        %632 = vmatprep.subr.mxu0 %v492
        %633 = vmatpush2.xpose.msra.mxu0 %v491
        %634 = vmatprep.subr.mxu0 %v488
        %635 = vmatpush2.xpose.msra.mxu0 %v487
        %636 = vmatprep.subr.mxu0 %v484
        %637 = vmatpush2.xpose.msra.mxu0 %v483
        %638 = vmatprep.subr.mxu0 %v480
        %639 = vmatpush2.xpose.msra.mxu0 %v479
        %640 = vmatprep.subr.mxu0 %v476
        %641 = vmatpush2.xpose.msra.mxu0 %v475
        %642 = vmatprep.subr.mxu0 %v472
        %643 = vmatpush2.xpose.msra.mxu0 %v471
        %644 = vmatprep.subr.mxu0 %v468
        %645 = vmatpush2.xpose.msra.mxu0 %v467
        %646 = vmatprep.subr.mxu0 %v464
        %647 = vmatpush2.xpose.msra.mxu0 %v463
        %648 = vmatprep.subr.mxu0 %v460
        %649 = vmatpush2.xpose.msra.mxu0 %v459
        %650 = vmatprep.subr.mxu0 %v456
        %651 = vmatpush2.xpose.msra.mxu0 %v455
        %652 = vmatprep.subr.mxu0 %v452
        %653 = vmatpush2.xpose.msra.mxu0 %v451
        %654 = vmatprep.mubr.f32.mxu0 %v380
        %655 = vmatmul.mubr.f32.gmra.mxu0 %v379
        %v656 = vpop.f32.mrf.mxu0
        %v657 = vadd.f32 %v580, %v656
        %v658 = vpop.f32.mrf.mxu0
        %v659 = vadd.f32 %v582, %v658
        %660 = vmatprep.mubr.f32.mxu0 %v384
        %661 = vmatmul.mubr.f32.gmra.mxu0 %v383
        %v662 = vpop.f32.mrf.mxu0
        %v663 = vadd.f32 %v586, %v662
        %v664 = vpop.f32.mrf.mxu0
        %v665 = vadd.f32 %v588, %v664
        %666 = vdwg.mxu0
        %v667 = vadd.f32 %v373, %v657
        %v668 = vadd.f32 %v374, %v659
        %v669 = vadd.f32 %v375, %v663
        %v670 = vadd.f32 %v376, %v665
        %671 = vst [vmem:[#allocation2] sm:$0xff] %v667
        %672 = vst [vmem:[#allocation2 + $0x8] sm:$0xff] %v668
        %673 = vst [vmem:[#allocation2 + $0x10] sm:$0xff] %v669
        %674 = vst [vmem:[#allocation2 + $0x18] sm:$0xff] %v670
        %p675 = scmp.eq.s32.totalorder %s30, 1
        // Predicated region
        $region65: #{tpu_custom_call.1} parent=47 // pred_check
          %p676 = pneg %p675
        $region66: #{tpu_custom_call.1} parent=47 // pred_check_branch
          %678 = sbr.rel (%p676) target = $region68
        $region67: #{tpu_custom_call.1} parent=47 // pred_region
          %v679 = vld [vmem:[#allocation2] sm:$0xff]
          %v680 = vld [vmem:[#allocation2 + $0x8] sm:$0xff]
          %v681 = vld [vmem:[#allocation2 + $0x10] sm:$0xff]
          %v682 = vld [vmem:[#allocation2 + $0x18] sm:$0xff]
          %v683 = vld [vmem:[%s2] sm:$0x3]
          %v685 = vlaneseq
          %v686 = vshrl.u32 %v685, 7
          %v687 = vsub.s32 0, %v686
          %v688 = vrot.slane %v683, %v687
          %v689 = vlaneseq
          %v690 = vshrl.u32 %v689, 7
          %v691 = vsub.s32 1, %v690
          %v692 = vrot.slane %v683, %v691
          %v695 = vadd.f32 %v679, %v688
          %v696 = vadd.f32 %v680, %v692
          %v697 = vadd.f32 %v681, %v688
          %v698 = vadd.f32 %v682, %v692
          %v699 = vadd.f32 %v695, %v696
          %700 = vadd.xlane.f32.xlu0 %v699
          %v701 = vpop.xlane.xlu0 %700
          %v702 = vadd.f32 %v697, %v698
          %703 = vadd.xlane.f32.xlu0 %v702
          %v704 = vpop.xlane.xlu0 %703
          %v705 = vrcp.pop 256.0
          %v706 = vmul.f32 %v701, %v705
          %v707 = vmul.f32 %v704, %v705
          %v708 = vsub.f32 %v695, %v706
          %v709 = vsub.f32 %v696, %v706
          %v710 = vsub.f32 %v697, %v707
          %v711 = vsub.f32 %v698, %v707
          %v712 = vmul.f32 %v708, %v708
          %v713 = vmul.f32 %v709, %v709
          %v714 = vmul.f32 %v710, %v710
          %v715 = vmul.f32 %v711, %v711
          %v716 = vadd.f32 %v712, %v713
          %717 = vadd.xlane.f32.xlu0 %v716
          %v718 = vpop.xlane.xlu0 %717
          %v719 = vadd.f32 %v714, %v715
          %720 = vadd.xlane.f32.xlu0 %v719
          %v721 = vpop.xlane.xlu0 %720
          %v722 = vmul.f32 %v718, %v705
          %v723 = vmul.f32 %v721, %v705
          %v724 = vadd.f32 %v722, 1e-05
          %v725 = vadd.f32 %v723, 1e-05
          %v726 = vrsqrt.pop %v724
          %v727 = vrsqrt.pop %v725
          %v728 = vmul.f32 %v708, %v726
          %v729 = vmul.f32 %v709, %v726
          %v730 = vmul.f32 %v710, %v727
          %v731 = vmul.f32 %v711, %v727
          %v732 = vld [vmem:[%s3] sm:$0x3]
          %v734 = vlaneseq
          %v735 = vshrl.u32 %v734, 7
          %v736 = vsub.s32 0, %v735
          %v737 = vrot.slane %v732, %v736
          %v738 = vlaneseq
          %v739 = vshrl.u32 %v738, 7
          %v740 = vsub.s32 1, %v739
          %v741 = vrot.slane %v732, %v740
          %v744 = vmul.f32 %v728, %v737
          %v745 = vmul.f32 %v729, %v741
          %v746 = vmul.f32 %v730, %v737
          %v747 = vmul.f32 %v731, %v741
          %v748 = vld [vmem:[%s4] sm:$0x3]
          %v750 = vlaneseq
          %v751 = vshrl.u32 %v750, 7
          %v752 = vsub.s32 0, %v751
          %v753 = vrot.slane %v748, %v752
          %v754 = vlaneseq
          %v755 = vshrl.u32 %v754, 7
          %v756 = vsub.s32 1, %v755
          %v757 = vrot.slane %v748, %v756
          %v760 = vadd.f32 %v744, %v753
          %v761 = vadd.f32 %v745, %v757
          %v762 = vadd.f32 %v746, %v753
          %v763 = vadd.f32 %v747, %v757
          %v764 = vmul.f32 %v760, 0.5
          %v765 = vmul.f32 %v761, 0.5
          %v766 = vmul.f32 %v762, 0.5
          %v767 = vmul.f32 %v763, 0.5
          %v768 = vmul.f32 %v760, 0.70710677
          %v769 = vmul.f32 %v761, 0.70710677
          %v770 = vmul.f32 %v762, 0.70710677
          %v771 = vmul.f32 %v763, 0.70710677
          %v772 = vand.u32 2147483647, %v768
          %v773 = vand.u32 2147483647, %v769
          %v774 = vand.u32 2147483647, %v770
          %v775 = vand.u32 2147483647, %v771
          %v776 = vmul.f32 %v772, 0.3275911
          %v777 = vmul.f32 %v773, 0.3275911
          %v778 = vmul.f32 %v774, 0.3275911
          %v779 = vmul.f32 %v775, 0.3275911
          %v780 = vadd.f32 %v776, 1.0
          %v781 = vadd.f32 %v777, 1.0
          %v782 = vadd.f32 %v778, 1.0
          %v783 = vadd.f32 %v779, 1.0
          %v784 = vrcp.pop %v780
          %v785 = vmul.f32 1.0, %v784
          %v786 = vrcp.pop %v781
          %v787 = vmul.f32 1.0, %v786
          %v788 = vrcp.pop %v782
          %v789 = vmul.f32 1.0, %v788
          %v790 = vrcp.pop %v783
          %v791 = vmul.f32 1.0, %v790
          %v792 = vmul.f32 %v785, 1.0614054
          %v793 = vmul.f32 %v787, 1.0614054
          %v794 = vmul.f32 %v789, 1.0614054
          %v795 = vmul.f32 %v791, 1.0614054
          %v796 = vadd.f32 %v792, -1.4531521
          %v797 = vadd.f32 %v793, -1.4531521
          %v798 = vadd.f32 %v794, -1.4531521
          %v799 = vadd.f32 %v795, -1.4531521
          %v800 = vmul.f32 %v796, %v785
          %v801 = vmul.f32 %v797, %v787
          %v802 = vmul.f32 %v798, %v789
          %v803 = vmul.f32 %v799, %v791
          %v804 = vadd.f32 %v800, 1.4214138
          %v805 = vadd.f32 %v801, 1.4214138
          %v806 = vadd.f32 %v802, 1.4214138
          %v807 = vadd.f32 %v803, 1.4214138
          %v808 = vmul.f32 %v804, %v785
          %v809 = vmul.f32 %v805, %v787
          %v810 = vmul.f32 %v806, %v789
          %v811 = vmul.f32 %v807, %v791
          %v812 = vadd.f32 %v808, -0.28449672
          %v813 = vadd.f32 %v809, -0.28449672
          %v814 = vadd.f32 %v810, -0.28449672
          %v815 = vadd.f32 %v811, -0.28449672
          %v816 = vmul.f32 %v812, %v785
          %v817 = vmul.f32 %v813, %v787
          %v818 = vmul.f32 %v814, %v789
          %v819 = vmul.f32 %v815, %v791
          %v820 = vadd.f32 %v816, 0.2548296
          %v821 = vadd.f32 %v817, 0.2548296
          %v822 = vadd.f32 %v818, 0.2548296
          %v823 = vadd.f32 %v819, 0.2548296
          %v824 = vmul.f32 %v820, %v785
          %v825 = vmul.f32 %v821, %v787
          %v826 = vmul.f32 %v822, %v789
          %v827 = vmul.f32 %v823, %v791
          %v828 = vsub.f32 0.0, %v772
          %v829 = vsub.f32 0.0, %v773
          %v830 = vsub.f32 0.0, %v774
          %v831 = vsub.f32 0.0, %v775
          %v832 = vmul.f32 %v828, %v772
          %v833 = vmul.f32 %v829, %v773
          %v834 = vmul.f32 %v830, %v774
          %v835 = vmul.f32 %v831, %v775
          %v836 = vmul.f32 %v832, 1.442695
          %v837 = vpow.pop %v836
          %v838 = vmul.f32 %v833, 1.442695
          %v839 = vpow.pop %v838
          %v840 = vmul.f32 %v834, 1.442695
          %v841 = vpow.pop %v840
          %v842 = vmul.f32 %v835, 1.442695
          %v843 = vpow.pop %v842
          %v844 = vmul.f32 %v824, %v837
          %v845 = vmul.f32 %v825, %v839
          %v846 = vmul.f32 %v826, %v841
          %v847 = vmul.f32 %v827, %v843
          %v848 = vsub.f32 1.0, %v844
          %v849 = vsub.f32 1.0, %v845
          %v850 = vsub.f32 1.0, %v846
          %v851 = vsub.f32 1.0, %v847
          %vm852 = vcmp.ge.f32.partialorder %v768, 0.0
          %vm853 = vcmp.ge.f32.partialorder %v769, 0.0
          %vm854 = vcmp.ge.f32.partialorder %v770, 0.0
          %vm855 = vcmp.ge.f32.partialorder %v771, 0.0
          %v856 = vsub.f32 0.0, %v848
          %v857 = vsub.f32 0.0, %v849
          %v858 = vsub.f32 0.0, %v850
          %v859 = vsub.f32 0.0, %v851
          %v860 = vsel %vm852, %v848, %v856
          %v861 = vsel %vm853, %v849, %v857
          %v862 = vsel %vm854, %v850, %v858
          %v863 = vsel %vm855, %v851, %v859
          %v864 = vadd.f32 %v860, 1.0
          %v865 = vadd.f32 %v861, 1.0
          %v866 = vadd.f32 %v862, 1.0
          %v867 = vadd.f32 %v863, 1.0
          %v868 = vmul.f32 %v764, %v864
          %v869 = vmul.f32 %v765, %v865
          %v870 = vmul.f32 %v766, %v866
          %v871 = vmul.f32 %v767, %v867
          %v872 = vld [vmem:[#allocation8] sm:$0xff]
          %v873 = vld [vmem:[#allocation8 + $0x8] sm:$0xff]
          %v874 = vld [vmem:[#allocation8 + $0x10] sm:$0xff]
          %v875 = vld [vmem:[#allocation8 + $0x18] sm:$0xff]
          %v876 = vld [vmem:[#allocation8 + $0x20] sm:$0xff]
          %v877 = vld [vmem:[#allocation8 + $0x28] sm:$0xff]
          %v878 = vld [vmem:[#allocation8 + $0x30] sm:$0xff]
          %v879 = vld [vmem:[#allocation8 + $0x38] sm:$0xff]
          %v880 = vld [vmem:[#allocation8 + $0x40] sm:$0xff]
          %v881 = vld [vmem:[#allocation8 + $0x48] sm:$0xff]
          %v882 = vld [vmem:[#allocation8 + $0x50] sm:$0xff]
          %v883 = vld [vmem:[#allocation8 + $0x58] sm:$0xff]
          %v884 = vld [vmem:[#allocation8 + $0x60] sm:$0xff]
          %v885 = vld [vmem:[#allocation8 + $0x68] sm:$0xff]
          %v886 = vld [vmem:[#allocation8 + $0x70] sm:$0xff]
          %v887 = vld [vmem:[#allocation8 + $0x78] sm:$0xff]
          %v888 = vld [vmem:[#allocation8 + $0x80] sm:$0xff]
          %v889 = vld [vmem:[#allocation8 + $0x88] sm:$0xff]
          %v890 = vld [vmem:[#allocation8 + $0x90] sm:$0xff]
          %v891 = vld [vmem:[#allocation8 + $0x98] sm:$0xff]
          %v892 = vld [vmem:[#allocation8 + $0xa0] sm:$0xff]
          %v893 = vld [vmem:[#allocation8 + $0xa8] sm:$0xff]
          %v894 = vld [vmem:[#allocation8 + $0xb0] sm:$0xff]
          %v895 = vld [vmem:[#allocation8 + $0xb8] sm:$0xff]
          %v896 = vld [vmem:[#allocation8 + $0xc0] sm:$0xff]
          %v897 = vld [vmem:[#allocation8 + $0xc8] sm:$0xff]
          %v898 = vld [vmem:[#allocation8 + $0xd0] sm:$0xff]
          %v899 = vld [vmem:[#allocation8 + $0xd8] sm:$0xff]
          %v900 = vld [vmem:[#allocation8 + $0xe0] sm:$0xff]
          %v901 = vld [vmem:[#allocation8 + $0xe8] sm:$0xff]
          %v902 = vld [vmem:[#allocation8 + $0xf0] sm:$0xff]
          %v903 = vld [vmem:[#allocation8 + $0xf8] sm:$0xff]
          %v904 = vld [vmem:[%s6] sm:$0x1]
          %v906 = vlaneseq
          %v907 = vshrl.u32 %v906, 7
          %v908 = vsub.s32 0, %v907
          %v909 = vrot.slane %v904, %v908
          %911 = vmatprep.subr.mxu0 %v903
          %912 = vmatpush1.xpose.msra.mxu0 %v902
          %913 = vmatprep.subr.mxu0 %v901
          %914 = vmatpush1.xpose.msra.mxu0 %v900
          %915 = vmatprep.subr.mxu0 %v899
          %916 = vmatpush1.xpose.msra.mxu0 %v898
          %917 = vmatprep.subr.mxu0 %v897
          %918 = vmatpush1.xpose.msra.mxu0 %v896
          %919 = vmatprep.subr.mxu0 %v895
          %920 = vmatpush1.xpose.msra.mxu0 %v894
          %921 = vmatprep.subr.mxu0 %v893
          %922 = vmatpush1.xpose.msra.mxu0 %v892
          %923 = vmatprep.subr.mxu0 %v891
          %924 = vmatpush1.xpose.msra.mxu0 %v890
          %925 = vmatprep.subr.mxu0 %v889
          %926 = vmatpush1.xpose.msra.mxu0 %v888
          %927 = vmatprep.subr.mxu0 %v887
          %928 = vmatpush1.xpose.msra.mxu0 %v886
          %929 = vmatprep.subr.mxu0 %v885
          %930 = vmatpush1.xpose.msra.mxu0 %v884
          %931 = vmatprep.subr.mxu0 %v883
          %932 = vmatpush1.xpose.msra.mxu0 %v882
          %933 = vmatprep.subr.mxu0 %v881
          %934 = vmatpush1.xpose.msra.mxu0 %v880
          %935 = vmatprep.subr.mxu0 %v879
          %936 = vmatpush1.xpose.msra.mxu0 %v878
          %937 = vmatprep.subr.mxu0 %v877
          %938 = vmatpush1.xpose.msra.mxu0 %v876
          %939 = vmatprep.subr.mxu0 %v875
          %940 = vmatpush1.xpose.msra.mxu0 %v874
          %941 = vmatprep.subr.mxu0 %v873
          %942 = vmatpush1.xpose.msra.mxu0 %v872
          %943 = vmatprep.subr.mxu0 0.0
          %944 = vmatpush2.xpose.msra.mxu0 0.0
          %945 = vmatprep.subr.mxu0 0.0
          %946 = vmatpush2.xpose.msra.mxu0 0.0
          %947 = vmatprep.subr.mxu0 0.0
          %948 = vmatpush2.xpose.msra.mxu0 0.0
          %949 = vmatprep.subr.mxu0 0.0
          %950 = vmatpush2.xpose.msra.mxu0 0.0
          %951 = vmatprep.subr.mxu0 0.0
          %952 = vmatpush2.xpose.msra.mxu0 0.0
          %953 = vmatprep.subr.mxu0 0.0
          %954 = vmatpush2.xpose.msra.mxu0 0.0
          %955 = vmatprep.subr.mxu0 0.0
          %956 = vmatpush2.xpose.msra.mxu0 0.0
          %957 = vmatprep.subr.mxu0 0.0
          %958 = vmatpush2.xpose.msra.mxu0 0.0
          %959 = vmatprep.subr.mxu0 0.0
          %960 = vmatpush2.xpose.msra.mxu0 0.0
          %961 = vmatprep.subr.mxu0 0.0
          %962 = vmatpush2.xpose.msra.mxu0 0.0
          %963 = vmatprep.subr.mxu0 0.0
          %964 = vmatpush2.xpose.msra.mxu0 0.0
          %965 = vmatprep.subr.mxu0 0.0
          %966 = vmatpush2.xpose.msra.mxu0 0.0
          %967 = vmatprep.subr.mxu0 0.0
          %968 = vmatpush2.xpose.msra.mxu0 0.0
          %969 = vmatprep.subr.mxu0 0.0
          %970 = vmatpush2.xpose.msra.mxu0 0.0
          %971 = vmatprep.subr.mxu0 0.0
          %972 = vmatpush2.xpose.msra.mxu0 0.0
          %973 = vmatprep.subr.mxu0 0.0
          %974 = vmatpush2.xpose.msra.mxu0 0.0
          %975 = vmatprep.mubr.f32.mxu0 %v869
          %976 = vmatmul.mubr.f32.gmra.mxu0 %v868
          %v977 = vpop.f32.mrf.mxu0
          %v978 = vadd.f32 %v909, %v977
          %v979 = vpop.f32.mrf.mxu0
          %980 = vmatprep.mubr.f32.mxu0 %v871
          %981 = vmatmul.mubr.f32.gmra.mxu0 %v870
          %v982 = vpop.f32.mrf.mxu0
          %v983 = vadd.f32 %v909, %v982
          %v984 = vpop.f32.mrf.mxu0
          %985 = vdwg.mxu0
          %986 = vst [vmem:[#allocation9] sm:$0xff] %v978
          %987 = vst [vmem:[#allocation9 + $0x8] sm:$0xff] %v983
        $region68: #{tpu_custom_call.1} parent=47 // pred_fallthru
          _
        // Predicated region
        $region69: #{tpu_custom_call.1} parent=47 // pred_check
          %p988 = pneg %p214
        $region70: #{tpu_custom_call.1} parent=47 // pred_check_branch
          %990 = sbr.rel (%p988) target = $region72
        $region71: #{tpu_custom_call.1} parent=47 // pred_region
          %s991 = smul.u32 2, %s29
          %s993 = ssub.s32 256, 256
          %994 = vsyncadd [#allocation5], %s993
          %s995 = smul.addr %s991, 128
          %s996 = scalar_lea.hbm %s7, %s995
          %s997 = sshll.u32 [#allocation9], 4
          %s998 = int_to_ptr.vmem [resolvable:$true] %s997
          %1003 = dma.vmem_to_hbm [thread:$0]  %s998, 256, %s996, [#allocation5], 128, 128, 8
        $region72: #{tpu_custom_call.1} parent=47 // pred_fallthru
          _
        // Predicated region
        $region73: #{tpu_custom_call.1} parent=47 // pred_check
          %p1004 = pneg %p214
        $region74: #{tpu_custom_call.1} parent=47 // pred_check_branch
          %1006 = sbr.rel (%p1004) target = $region76
        $region75: #{tpu_custom_call.1} parent=47 // pred_region
          %1007 = dma.done [#allocation5], 256
        $region76: #{tpu_custom_call.1} parent=47 // pred_fallthru
          _
      $region48: #{tpu_custom_call.1} parent=5 // pred_fallthru
        _
      %p1008 = scmp.le.s32.totalorder 2, %s20
      // Predicated region
      $region77: #{tpu_custom_call.1} parent=5 // pred_check
        %p1009 = pneg %p1008
      $region78: #{tpu_custom_call.1} parent=5 // pred_check_branch
        %1011 = sbr.rel (%p1009) target = $region80
      $region79: #{tpu_custom_call.1} parent=5 // pred_region
        %s1012 = ssub.s32 %s20, 2
      $region80: #{tpu_custom_call.1} parent=5 // pred_fallthru
        _
    $region6: #{tpu_custom_call.1} parent=1 // loop_footer
      %s24 = sadd.s32 1, %s20
    $region7: #{tpu_custom_call.1} parent=1 // loop_footer_branch
      %19 = sbr.rel target = $region3
    $region8: #{tpu_custom_call.1} parent=1 // loop_exit
      _
    %1013 = vsyncpa [#allocation4], 1
    %s1014 = scalar_lea.sflag [#allocation4], 1
    %1015 = vsyncpa %s1014, 1
    %1016 = vsyncpa [#allocation7], 1
    %s1017 = scalar_lea.sflag [#allocation7], 1
    %1018 = vsyncpa %s1017, 1
    %1019 = vsyncpa [#allocation5], 1
    %s1020 = scalar_lea.sflag [#allocation5], 1
    %1021 = vsyncpa %s1020, 1

</llo_original>
